<compile_context>
chip_gen: v7x
topology: tpu7x:2x2x1
jax: 0.10.0
libtpu: 0.0.40
codegen_flags: <defaults>
</compile_context>

<pallas_src>
import functools

import numpy as np
import jax
import jax.numpy as jnp
from jax.experimental import pallas as pl
from jax.experimental.pallas import tpu as pltpu


def _oks_kernel(d_ref, vbits_ref, inva_ref, invs_ref, loss_ref, *, linear, eps):
    # d_ref:     (2, Kp, bn)  sigma-scaled keypoint coordinate differences
    # vbits_ref: (1, bn)      int32, bit k == 1  <=>  keypoint k is valid
    # inva_ref:  (1, bn)      1 / area          (0 on padded poses)
    # invs_ref:  (1, bn)      1 / valid.sum()   (0 on padded / all-invalid poses)
    ks = d_ref.shape[1]
    dx = d_ref[0]                                      # (Kp, bn)
    dy = d_ref[1]
    # (dx*s)^2 + (dy*s)^2 with s = sqrt(1/(2*(2*sigma)^2)) already folded in,
    # so this is  squared_distance / (area * variance * 2)  after the 1/area mul.
    arg = (dx * dx + dy * dy) * inva_ref[...]          # (Kp, bn)
    kidx = jax.lax.broadcasted_iota(jnp.int32, (ks, 1), 0)
    bit = (vbits_ref[...] >> kidx) & 1                 # (Kp, bn) int32 0/1
    e = jnp.where(bit != 0, jnp.exp(-arg), 0.0)        # masked exp, no mask stream
    oks = jnp.sum(e, axis=0, keepdims=True) * invs_ref[...]   # (1, bn)
    oks = jnp.maximum(oks, eps)                        # clamp(min=eps)
    if linear:
        loss_ref[...] = 1.0 - oks
    else:
        loss_ref[...] = -jnp.log(oks)


@functools.partial(jax.jit, static_argnames=("linear", "eps", "block_n"))
def oks_loss_pallas(pred, target, valid, area, sigmas, *,
                    linear=False, eps=1e-6, block_n=16384):
    """Per-pose OKS loss, shape (n,), computed in a Pallas kernel."""
    n, two_k = pred.shape
    k = two_k // 2
    assert target.shape == (n, two_k)
    # TODO(synk): bit-packed mask assumes `valid` is a 0/1 visibility flag
    # (as in the reference); non-binary valid weights would need an f32 mask.
    assert k <= 31, "bit-packed valid mask supports at most 31 keypoints"
    f32 = jnp.float32

    # Sublane-pad keypoints to a multiple of 8, lane-pad poses to block_n.
    ks = max(8, ((k + 7) // 8) * 8)
    n128 = ((max(n, 1) + 127) // 128) * 128
    bn = min(block_n, n128)
    if n128 >= 256:
        # Keep >= 2 grid steps so the "parallel" axis can split across v7x's
        # two TensorCores (no measurable cost on 1-TC v5e/v6e).
        bn = min(bn, ((n128 + 255) // 256) * 128)
    bn = max(128, (bn // 128) * 128)
    n_pad = ((n128 + bn - 1) // bn) * bn

    # Single diff slab with the per-keypoint sigma constant folded in:
    # s_k = sqrt(1 / (2 * (2*sigma_k)^2)) = 1 / (2*sqrt(2)*sigma_k).
    scale = 1.0 / (2.0 * jnp.sqrt(jnp.float32(2.0)) * sigmas.astype(f32))   # (k,)
    d = (pred.astype(f32) - target.astype(f32)).reshape(n, k, 2)
    d = d * scale[None, :, None]
    d = jnp.transpose(d, (2, 1, 0))                                  # (2, k, n)
    d = jnp.pad(d, ((0, 0), (0, ks - k), (0, n_pad - n)))            # (2, Kp, Np)

    # Bit-pack the valid flags: pose -> one int32 lane value.
    v = valid.astype(f32)
    kbit = np.left_shift(np.int32(1), np.arange(k, dtype=np.int32))  # (k,) static
    vbits = jnp.sum(jnp.where(v > 0, kbit[None, :], 0).astype(jnp.int32),
                    axis=-1, dtype=jnp.int32)                        # (n,)
    vbits = jnp.pad(vbits.reshape(1, n), ((0, 0), (0, n_pad - n)))   # (1, Np)

    # 1 / valid.sum() applied after the sublane reduce (guard vsum == 0).
    vsum = jnp.sum(v, axis=-1)                                       # (n,)
    invs = jnp.where(vsum > 0, 1.0 / jnp.maximum(vsum, 1e-30), 0.0)
    invs = jnp.pad(invs.reshape(1, n), ((0, 0), (0, n_pad - n)))     # (1, Np)

    # 1 / area; padded poses get 0 -> finite (-log(eps)) values in the tail.
    inv_area = jnp.pad((1.0 / area.astype(f32)).reshape(1, n),
                       ((0, 0), (0, n_pad - n)), constant_values=0.0)

    grid = (n_pad // bn,)
    loss_pad = pl.pallas_call(
        functools.partial(_oks_kernel, linear=linear, eps=float(eps)),
        out_shape=jax.ShapeDtypeStruct((1, n_pad), jnp.float32),
        grid_spec=pltpu.PrefetchScalarGridSpec(
            num_scalar_prefetch=0,
            grid=grid,
            in_specs=[
                pl.BlockSpec((2, ks, bn), lambda i: (0, 0, i)),  # diff slab
                pl.BlockSpec((1, bn), lambda i: (0, i)),         # packed valid bits
                pl.BlockSpec((1, bn), lambda i: (0, i)),         # 1/area row
                pl.BlockSpec((1, bn), lambda i: (0, i)),         # 1/valid.sum row
            ],
            out_specs=pl.BlockSpec((1, bn), lambda i: (0, i)),   # lane-dense out
        ),
        compiler_params=pltpu.CompilerParams(
            dimension_semantics=("parallel",)),
    )(d, vbits, inv_area, invs)

    return loss_pad[0, :n]


class OKSLoss:
    """JAX/Pallas port of opera OKSLoss (forward only)."""

    def __init__(self, linear=False, num_keypoints=17, eps=1e-6,
                 reduction='mean', loss_weight=1.0):
        self.linear = linear
        self.eps = eps
        self.reduction = reduction
        self.loss_weight = loss_weight
        if num_keypoints == 17:
            self.sigmas = jnp.array(
                [.26, .25, .25, .35, .35, .79, .79, .72, .72, .62, .62,
                 1.07, 1.07, .87, .87, .89, .89], dtype=jnp.float32) / 10.0
        elif num_keypoints == 14:
            self.sigmas = jnp.array(
                [.79, .79, .72, .72, .62, .62, 1.07, 1.07, .87, .87,
                 .89, .89, .79, .79], dtype=jnp.float32) / 10.0
        else:
            raise ValueError(f'Unsupported keypoints number {num_keypoints}')

    def __call__(self, pred, target, valid, area, weight=None,
                 avg_factor=None, reduction_override=None):
        assert reduction_override in (None, 'none', 'mean', 'sum')
        reduction = reduction_override if reduction_override else self.reduction

        # TODO(synk): this zero-weight early exit inspects a traced value and
        # therefore only works eagerly (same as the PyTorch data-dependent branch).
        if weight is not None and (not jnp.any(weight > 0)) and reduction != 'none':
            if pred.ndim == weight.ndim + 1:
                weight = weight[:, None]
            return (pred * weight).sum()
        if weight is not None and weight.ndim > 1:
            assert weight.shape == pred.shape
            weight = weight.mean(-1)

        loss = oks_loss_pallas(pred, target, valid, area, self.sigmas,
                               linear=self.linear, eps=self.eps)

        # weight_reduce_loss semantics (mmdet)
        if weight is not None:
            loss = loss * weight
        if avg_factor is None:
            if reduction == 'mean':
                loss = loss.mean()
            elif reduction == 'sum':
                loss = loss.sum()
        else:
            if reduction == 'mean':
                loss = loss.sum() / avg_factor
            elif reduction != 'none':
                raise ValueError('avg_factor can only be used with mean/none')
        return self.loss_weight * loss


def _reference_oks_loss(pred, target, valid, area, sigmas, linear, eps):
    """Pure-jnp per-pose reference mirroring the PyTorch code."""
    variances = (sigmas * 2) ** 2
    n = pred.shape[0]
    k = pred.shape[-1] // 2
    kp_p = pred.reshape(n, k, 2)
    kp_g = target.reshape(n, k, 2)
    sq = (kp_p[:, :, 0] - kp_g[:, :, 0]) ** 2 + (kp_p[:, :, 1] - kp_g[:, :, 1]) ** 2
    sq0 = sq / (area[:, None] * variances[None, :] * 2)
    sq1 = jnp.exp(-sq0) * valid
    oks = sq1.sum(1) / valid.sum(1)
    oks = jnp.maximum(oks, eps)
    loss = (1 - oks) if linear else -jnp.log(oks)
    return loss


if __name__ == "__main__":
    key = jax.random.PRNGKey(0)
    k1, k2, k3, k4 = jax.random.split(key, 4)

    n, num_kpts = 8, 17
    pred = jax.random.normal(k1, (n, 2 * num_kpts), dtype=jnp.float32)
    # keep distances small so the exp/clamp path is actually exercised
    target = pred + 0.05 * jax.random.normal(k2, (n, 2 * num_kpts), dtype=jnp.float32)
    valid = (jax.random.uniform(k3, (n, num_kpts)) > 0.3).astype(jnp.float32)
    valid = valid.at[:, 0].set(1.0)  # ensure every pose has >=1 valid keypoint
    area = jax.random.uniform(k4, (n,), minval=0.5, maxval=2.0).astype(jnp.float32)

    # log-scale loss, mean reduction
    module = OKSLoss(linear=False, num_keypoints=num_kpts,
                     eps=1e-6, reduction='mean', loss_weight=1.0)
    loss = module(pred, target, valid, area)
    jax.block_until_ready(loss)
    ref = _reference_oks_loss(pred, target, valid, area, module.sigmas,
                              module.linear, module.eps).mean()
    np.testing.assert_allclose(np.asarray(loss), np.asarray(ref),
                               rtol=1e-4, atol=1e-5)

    # linear-scale loss, per-pose (reduction='none')
    module_lin = OKSLoss(linear=True, num_keypoints=num_kpts,
                         eps=1e-6, reduction='none', loss_weight=1.0)
    loss_lin = module_lin(pred, target, valid, area)
    jax.block_until_ready(loss_lin)
    ref_lin = _reference_oks_loss(pred, target, valid, area, module_lin.sigmas,
                                  True, module_lin.eps)
    np.testing.assert_allclose(np.asarray(loss_lin), np.asarray(ref_lin),
                               rtol=1e-4, atol=1e-5)

    print("KERNEL_OK")
</pallas_src>

<mosaic_0001>
module attributes {stable_mosaic.version = 11 : i64} {
  func.func @_oks_kernel(%arg0: i32, %arg1: memref<2x24x128xf32, #tpu.memory_space<vmem>>, %arg2: memref<1x128xi32, #tpu.memory_space<vmem>>, %arg3: memref<1x128xf32, #tpu.memory_space<vmem>>, %arg4: memref<1x128xf32, #tpu.memory_space<vmem>>, %arg5: memref<1x128xf32, #tpu.memory_space<vmem>>) attributes {dimension_semantics = [#tpu.dimension_semantics<parallel>], iteration_bounds = array<i64: 1>, scalar_prefetch = 0 : i64, scratch_operands = 0 : i64, tpu.core_type = #tpu.core_type<tc>, window_params = [{transform_indices = @transform_0, window_bounds = array<i64: 2, 24, 128>}, {transform_indices = @transform_1, window_bounds = array<i64: 1, 128>}, {transform_indices = @transform_2, window_bounds = array<i64: 1, 128>}, {transform_indices = @transform_3, window_bounds = array<i64: 1, 128>}, {transform_indices = @transform_4, window_bounds = array<i64: 1, 128>}]} {
    %c0 = arith.constant 0 : index
    %c0_0 = arith.constant 0 : index
    %c0_1 = arith.constant 0 : index
    %0 = vector.load %arg1[%c0, %c0_0, %c0_1] : memref<2x24x128xf32, #tpu.memory_space<vmem>>, vector<1x24x128xf32>
    %1 = vector.shape_cast %0 : vector<1x24x128xf32> to vector<24x128xf32>
    %c1 = arith.constant 1 : index
    %c0_2 = arith.constant 0 : index
    %c0_3 = arith.constant 0 : index
    %2 = vector.load %arg1[%c1, %c0_2, %c0_3] : memref<2x24x128xf32, #tpu.memory_space<vmem>>, vector<1x24x128xf32>
    %3 = vector.shape_cast %2 : vector<1x24x128xf32> to vector<24x128xf32>
    %4 = arith.mulf %1, %1 : vector<24x128xf32>
    %5 = arith.mulf %3, %3 : vector<24x128xf32>
    %6 = arith.addf %4, %5 : vector<24x128xf32>
    %c0_4 = arith.constant 0 : index
    %c0_5 = arith.constant 0 : index
    %7 = vector.load %arg3[%c0_4, %c0_5] : memref<1x128xf32, #tpu.memory_space<vmem>>, vector<1x128xf32>
    %8 = vector.broadcast %7 : vector<1x128xf32> to vector<24x128xf32>
    %9 = arith.mulf %6, %8 : vector<24x128xf32>
    %10 = tpu.iota {dimensions = array<i32: 0>} : vector<24x1xi32>
    %c0_6 = arith.constant 0 : index
    %c0_7 = arith.constant 0 : index
    %11 = vector.load %arg2[%c0_6, %c0_7] : memref<1x128xi32, #tpu.memory_space<vmem>>, vector<1x128xi32>
    %12 = vector.broadcast %11 : vector<1x128xi32> to vector<24x128xi32>
    %13 = vector.broadcast %10 : vector<24x1xi32> to vector<24x128xi32>
    %14 = arith.shrsi %12, %13 : vector<24x128xi32>
    %c1_i32 = arith.constant 1 : i32
    %15 = vector.broadcast %c1_i32 : i32 to vector<24x128xi32>
    %16 = arith.andi %14, %15 : vector<24x128xi32>
    %c0_i32 = arith.constant 0 : i32
    %17 = vector.broadcast %c0_i32 : i32 to vector<24x128xi32>
    %18 = arith.cmpi ne, %16, %17 : vector<24x128xi32>
    %cst = arith.constant 0.000000e+00 : f32
    %19 = vector.broadcast %cst : f32 to vector<24x128xf32>
    %20 = arith.subf %19, %9 : vector<24x128xf32>
    %21 = math.exp %20 : vector<24x128xf32>
    %cst_8 = arith.constant 0.000000e+00 : f32
    %22 = vector.broadcast %cst_8 : f32 to vector<24x128xf32>
    %23 = arith.select %18, %21, %22 : vector<24x128xi1>, vector<24x128xf32>
    %cst_9 = arith.constant dense<0.000000e+00> : vector<128xf32>
    %24 = vector.multi_reduction <add>, %23, %cst_9 [0] : vector<24x128xf32> to vector<128xf32>
    %25 = vector.shape_cast %24 : vector<128xf32> to vector<1x128xf32>
    %c0_10 = arith.constant 0 : index
    %c0_11 = arith.constant 0 : index
    %26 = vector.load %arg4[%c0_10, %c0_11] : memref<1x128xf32, #tpu.memory_space<vmem>>, vector<1x128xf32>
    %27 = arith.mulf %25, %26 : vector<1x128xf32>
    %cst_12 = arith.constant 9.99999997E-7 : f32
    %28 = vector.broadcast %cst_12 : f32 to vector<1x128xf32>
    %29 = arith.maximumf %27, %28 : vector<1x128xf32>
    %30 = math.log %29 : vector<1x128xf32>
    %cst_13 = arith.constant 0.000000e+00 : f32
    %31 = vector.broadcast %cst_13 : f32 to vector<1x128xf32>
    %32 = arith.subf %31, %30 : vector<1x128xf32>
    %c0_14 = arith.constant 0 : index
    %c0_15 = arith.constant 0 : index
    %33 = vector.load %arg5[%c0_14, %c0_15] : memref<1x128xf32, #tpu.memory_space<vmem>>, vector<1x128xf32>
    tpu.vector_store %arg5[%c0_14, %c0_15], %32 {strides = array<i32>} : memref<1x128xf32, #tpu.memory_space<vmem>>, vector<1x128xf32>,
    return
  }
  func.func @transform_0(%arg0: i32) -> (i32, i32, i32) {
    %c0_i32 = arith.constant 0 : i32
    %c0_i32_0 = arith.constant 0 : i32
    %c0_i32_1 = arith.constant 0 : i32
    return %c0_i32, %c0_i32_0, %arg0 : i32, i32, i32
  }
  func.func @transform_1(%arg0: i32) -> (i32, i32) {
    %c0_i32 = arith.constant 0 : i32
    %c0_i32_0 = arith.constant 0 : i32
    return %c0_i32, %arg0 : i32, i32
  }
  func.func @transform_2(%arg0: i32) -> (i32, i32) {
    %c0_i32 = arith.constant 0 : i32
    %c0_i32_0 = arith.constant 0 : i32
    return %c0_i32, %arg0 : i32, i32
  }
  func.func @transform_3(%arg0: i32) -> (i32, i32) {
    %c0_i32 = arith.constant 0 : i32
    %c0_i32_0 = arith.constant 0 : i32
    return %c0_i32, %arg0 : i32, i32
  }
  func.func @transform_4(%arg0: i32) -> (i32, i32) {
    %c0_i32 = arith.constant 0 : i32
    %c0_i32_0 = arith.constant 0 : i32
    return %c0_i32, %arg0 : i32, i32
  }
}

</mosaic_0001>

<llo_original>
// kernel: sub.1
$region0: #{sub.1}
  #allocation2 [shape = 's32[1]{0}', space=sflag, size = 0x4, scoped, tag = 'scoped memory for sub.1']
  %s0 = inlined_call_operand.vmem [shape: f32[8,34], index: 0, kind: input, shape index: {}]
  %s1 = inlined_call_operand.hbm [shape: f32[8,34], index: 1, kind: input, shape index: {}]
  %s2 = inlined_call_operand.vmem [shape: f32[8,34], index: 2, kind: output, shape index: {}]
  $region1: #{sub.1} parent=0
    #allocation0 [shape = 'u8[4096]{0}', space=vmem, size = 0x1000, scoped, tag = 'operand span for operand 1']
    #allocation1 [shape = 's32[1]{0}', space=sflag, size = 0x4, scoped, tag = 'scoped memory for sub.1']
    %3 = vsyncpa [#allocation1], 0
    %s5 = ssub.s32 128, 128
    %6 = vsyncadd [#allocation1], %s5
    %s8 = sshll.u32 [#allocation0], 4
    %s9 = int_to_ptr.vmem [resolvable:$true] %s8
    %11 = dma.hbm_to_vmem [thread:$0]  %s1, 128, %s9, [#allocation1]
    %12 = dma.done [#allocation1], 128
    %v13 = vld [vmem:[%s0] sm:$0xff]
    %v14 = vld [vmem:[#allocation0] sm:$0xff]
    %15 = xla_tuple %v13, %v14
    %16 = xla_tuple %15
    %v17 = vsub.f32 %v13, %v14
    %18 = xla_tuple %v17
    %19 = vst [vmem:[%s2] sm:$0xff] %v17
    %20 = vsyncpa [#allocation1], 1

// kernel: oks_loss_pallas.1
$region0: #{oks_loss_pallas.1}
  #allocation0 [shape = 'u32[]', space=smem, size = 0x4, offset = 0x4, fixed_abs, tag = 'smem constant byte address 0x4 - core index']
  #allocation1 [shape = 'u32[144,128]{1,0:T(1,128)}', space=vmem, size = 0x12000, scoped, tag = 'internal scratch']
  %s0 = inlined_call_operand.vmem [shape: f32[2,24,128], index: 0, kind: input, shape index: {}]
  %s1 = inlined_call_operand.vmem [shape: s32[1,128], index: 1, kind: input, shape index: {}]
  %s2 = inlined_call_operand.vmem [shape: f32[1,128], index: 2, kind: input, shape index: {}]
  %s3 = inlined_call_operand.vmem [shape: f32[1,128], index: 3, kind: input, shape index: {}]
  %s4 = inlined_call_operand.vmem [shape: f32[1,128], index: 4, kind: output, shape index: {}]
  %s5 = sld [smem:[#allocation0]]
  $region26: #{oks_loss_pallas.1} parent=0
    _
  %s7 = ssub.s32 1, %s5
  %s8 = scalar_select 0, %s7, %s5
  // Predicated region
  $region2: #{oks_loss_pallas.1} parent=0 // pred_check
    _
  $region3: #{oks_loss_pallas.1} parent=0 // pred_check_branch
    %10 = sbr.rel (0) target = $region5
  $region4: #{oks_loss_pallas.1} parent=0 // pred_region
    _
  $region5: #{oks_loss_pallas.1} parent=0 // pred_fallthru
    _
  // Predicated region
  $region6: #{oks_loss_pallas.1} parent=0 // pred_check
    _
  $region7: #{oks_loss_pallas.1} parent=0 // pred_check_branch
    %12 = sbr.rel (0) target = $region9
  $region8: #{oks_loss_pallas.1} parent=0 // pred_region
    _
  $region9: #{oks_loss_pallas.1} parent=0 // pred_fallthru
    _
  // Predicated region
  $region10: #{oks_loss_pallas.1} parent=0 // pred_check
    _
  $region11: #{oks_loss_pallas.1} parent=0 // pred_check_branch
    %14 = sbr.rel (0) target = $region13
  $region12: #{oks_loss_pallas.1} parent=0 // pred_region
    _
  $region13: #{oks_loss_pallas.1} parent=0 // pred_fallthru
    _
  // Predicated region
  $region14: #{oks_loss_pallas.1} parent=0 // pred_check
    _
  $region15: #{oks_loss_pallas.1} parent=0 // pred_check_branch
    %16 = sbr.rel (0) target = $region17
  $region16: #{oks_loss_pallas.1} parent=0 // pred_region
    _
  $region17: #{oks_loss_pallas.1} parent=0 // pred_fallthru
    _
  %v17 = vld [vmem:[%s0] sm:$0xff]
  %v18 = vld [vmem:[%s0 + $0x8] sm:$0xff]
  %v19 = vld [vmem:[%s0 + $0x10] sm:$0xff]
  %s20 = scalar_lea.vmem %s0, 24
  %v21 = vld [vmem:[%s20] sm:$0xff]
  %v22 = vld [vmem:[%s20 + $0x8] sm:$0xff]
  %v23 = vld [vmem:[%s20 + $0x10] sm:$0xff]
  %v24 = vmul.f32 %v17, %v17
  %v25 = vmul.f32 %v18, %v18
  %v26 = vmul.f32 %v19, %v19
  %v27 = vmul.f32 %v21, %v21
  %v28 = vmul.f32 %v22, %v22
  %v29 = vmul.f32 %v23, %v23
  %v30 = vadd.f32 %v24, %v27
  %v31 = vadd.f32 %v25, %v28
  %v32 = vadd.f32 %v26, %v29
  %v33 = vld [vmem:[%s2] sm:$0x1]
  %v35 = vlaneseq
  %v36 = vshrl.u32 %v35, 7
  %v37 = vsub.s32 0, %v36
  %v38 = vrot.slane %v33, %v37
  %v40 = vmul.f32 %v30, %v38
  %v41 = vmul.f32 %v31, %v38
  %v42 = vmul.f32 %v32, %v38
  %v43 = vlaneseq
  %v44 = vshrl.u32 %v43, 7
  %v45 = vadd.s32 %v44, 8
  %v46 = vadd.s32 %v44, 16
  %v47 = vld [vmem:[%s1] sm:$0x1]
  %v48 = vlaneseq
  %v49 = vshrl.u32 %v48, 7
  %v50 = vsub.s32 0, %v49
  %v51 = vrot.slane %v47, %v50
  %v52 = vshra.s32 %v51, %v44
  %v53 = vshra.s32 %v51, %v45
  %v54 = vshra.s32 %v51, %v46
  %v55 = vand.u32 %v52, 1
  %v56 = vand.u32 %v53, 1
  %v57 = vand.u32 %v54, 1
  %vm58 = vcmp.ne.s32.totalorder %v55, 0
  %vm59 = vcmp.ne.s32.totalorder %v56, 0
  %vm60 = vcmp.ne.s32.totalorder %v57, 0
  %v61 = vsub.f32 0.0, %v40
  %v62 = vsub.f32 0.0, %v41
  %v63 = vsub.f32 0.0, %v42
  %v64 = vmul.f32 %v61, 1.442695
  %v65 = vpow.pop %v64
  %v66 = vmul.f32 %v62, 1.442695
  %v67 = vpow.pop %v66
  %v68 = vmul.f32 %v63, 1.442695
  %v69 = vpow.pop %v68
  %v70 = vsel %vm58, %v65, 0.0
  %v71 = vsel %vm59, %v67, 0.0
  %v72 = vsel %vm60, %v69, 0.0
  %v73 = vadd.f32 %v70, %v71
  %v74 = vadd.f32 %v73, %v72
  %v75 = vrot.slane %v74, 4
  %v76 = vadd.f32 %v74, %v75
  %v77 = vrot.slane %v76, 2
  %v78 = vadd.f32 %v76, %v77
  %v79 = vrot.slane %v78, 1
  %v80 = vadd.f32 %v78, %v79
  %v81 = vld [vmem:[%s3] sm:$0x1]
  %v82 = vmul.f32 %v80, %v81
  %v83 = vmax.f32 %v82, 1e-06
  %v84 = vlog2.pop %v83
  %v85 = vmul.f32 %v84, 0.6931472
  %v86 = vsub.f32 0.0, %v85
  %87 = vst [vmem:[%s4] sm:$0x1] %v86
  // Predicated region
  $region18: #{oks_loss_pallas.1} parent=0 // pred_check
    _
  $region19: #{oks_loss_pallas.1} parent=0 // pred_check_branch
    %89 = sbr.rel (0) target = $region21
  $region20: #{oks_loss_pallas.1} parent=0 // pred_region
    _
  $region21: #{oks_loss_pallas.1} parent=0 // pred_fallthru
    _
  // Predicated region
  $region22: #{oks_loss_pallas.1} parent=0 // pred_check
    _
  $region23: #{oks_loss_pallas.1} parent=0 // pred_check_branch
    %91 = sbr.rel (0) target = $region25
  $region24: #{oks_loss_pallas.1} parent=0 // pred_region
    _
  $region25: #{oks_loss_pallas.1} parent=0 // pred_fallthru
    _

</llo_original>
